<compile_context>
chip_gen: v6e
topology: v6e:2x2x1
jax: 0.10.0
libtpu: 0.0.40
codegen_flags: <defaults>
</compile_context>

<pallas_src>
import jax
import jax.numpy as jnp
from jax.experimental import pallas as pl
from jax.experimental.pallas import tpu as pltpu


def _round_up(n, m):
    return (n + m - 1) // m * m


def _dynamic_net_kernel(x_ref, w1_ref, b1_ref, w2_ref, b2_ref, out_ref):
    # Hidden layer: Linear + ReLU, accumulated in f32 on the MXU.
    x = x_ref[...].astype(w1_ref.dtype)            # no-op on the default f32 path
    h = jnp.dot(x, w1_ref[...], preferred_element_type=jnp.float32)
    h = jnp.maximum(h + b1_ref[...], 0.0)          # b1: [1, Hp] broadcasts over rows
    # Output layer: Linear + Tanh (f32 accumulation; tanh on the EUP).
    o = jnp.dot(h.astype(w2_ref.dtype), w2_ref[...],
                preferred_element_type=jnp.float32)
    out_ref[...] = jnp.tanh(o + b2_ref[...]).astype(out_ref.dtype)


def dynamic_network_forward(x, w1, b1, w2, b2, *, block_b=2048, matmul_dtype=None):
    """x: [B, input_size]; w1: [input_size, H]; b1: [H]; w2: [H, E]; b2: [E]."""
    B, K = x.shape
    Kw, H = w1.shape
    He, E = w2.shape
    assert Kw == K and He == H

    # ---- lane-dense packing factor (fold `pack` batch rows into lanes) -------
    pack = 1
    for p in (4, 2):
        if B % p == 0 and E * p <= 128:
            pack = p
            break

    rows = B // pack
    Kp, Hp, Ep = K * pack, H * pack, E * pack

    xp = x.reshape(rows, Kp)                       # free row-major reshape (no copy)
    if pack > 1:
        eye = jnp.eye(pack, dtype=w1.dtype)
        w1p = jnp.kron(eye, w1)                    # [Kp, Hp] block-diagonal
        w2p = jnp.kron(eye, w2)                    # [Hp, Ep] block-diagonal
        b1p = jnp.tile(b1, pack)
        b2p = jnp.tile(b2, pack)
    else:
        w1p, w2p, b1p, b2p = w1, w2, b1, b2
    if matmul_dtype is not None:                   # v5e fast path: bf16 MXU inputs
        w1p = w1p.astype(matmul_dtype)
        w2p = w2p.astype(matmul_dtype)
    b1_2d = b1p.reshape(1, Hp).astype(jnp.float32)
    b2_2d = b2p.reshape(1, Ep).astype(jnp.float32)

    # ---- batch block (packed rows) -------------------------------------------
    # Big blocks amortize per-step overhead; aim for >= 4 grid steps when the
    # batch is big enough so both v7x TensorCores get work and DMA is pipelined.
    max_rows = max(block_b // pack, 8)
    if rows <= 8:
        btp = rows                                 # single block == full dim
    else:
        btp = max(8, min(max_rows, _round_up(pl.cdiv(rows, 4), 8)))
    grid = pl.cdiv(rows, btp)                      # ragged last block handled by Pallas

    itemsize = int(jnp.dtype(x.dtype).itemsize)
    cost = pl.CostEstimate(
        flops=int(2 * B * (K * H + H * E)),
        transcendentals=int(B * E),
        bytes_accessed=int(B * K * itemsize + B * E * itemsize
                           + (w1p.size + w2p.size) * itemsize
                           + (b1_2d.size + b2_2d.size) * 4),
    )

    out = pl.pallas_call(
        _dynamic_net_kernel,
        out_shape=jax.ShapeDtypeStruct((rows, Ep), x.dtype),
        grid=(grid,),
        in_specs=[
            # x streams one batch tile per grid step (last dim == full array dim).
            pl.BlockSpec((btp, Kp), lambda i: (i, 0)),
            # Weights / biases: constant block index => resident in VMEM.
            pl.BlockSpec((Kp, Hp), lambda i: (0, 0)),
            pl.BlockSpec((1, Hp), lambda i: (0, 0)),
            pl.BlockSpec((Hp, Ep), lambda i: (0, 0)),
            pl.BlockSpec((1, Ep), lambda i: (0, 0)),
        ],
        out_specs=pl.BlockSpec((btp, Ep), lambda i: (i, 0)),
        compiler_params=pltpu.CompilerParams(
            # Batch axis is embarrassingly parallel -> shards across both
            # TensorCores on v7x; harmless on single-TC v5e/v6e.
            dimension_semantics=("parallel",)),
        cost_estimate=cost,
    )(xp, w1p, b1_2d, w2p, b2_2d)

    return out.reshape(B, E)                       # free row-major reshape back


def init_params(key, input_size, hidden_neurons, embedding_size, dtype=jnp.float32):
    """Deterministic init mimicking PyTorch nn.Linear default (U(-1/sqrt(in), 1/sqrt(in)))."""
    k1, k2, k3, k4 = jax.random.split(key, 4)
    lim1 = 1.0 / (input_size ** 0.5)
    lim2 = 1.0 / (hidden_neurons ** 0.5)
    w1 = jax.random.uniform(k1, (input_size, hidden_neurons), dtype, -lim1, lim1)
    b1 = jax.random.uniform(k2, (hidden_neurons,), dtype, -lim1, lim1)
    w2 = jax.random.uniform(k3, (hidden_neurons, embedding_size), dtype, -lim2, lim2)
    b2 = jax.random.uniform(k4, (embedding_size,), dtype, -lim2, lim2)
    return w1, b1, w2, b2


def _reference(x, w1, b1, w2, b2):
    return jnp.tanh(jnp.maximum(x @ w1 + b1, 0.0) @ w2 + b2)


if __name__ == "__main__":
    # Shapes consistent with the module: latent state + one-hot action -> next latent.
    input_size = 36       # e.g. embedding (32) concatenated with one-hot action (4)
    hidden_neurons = 32
    embedding_size = 32

    key = jax.random.PRNGKey(0)
    kp, kx1, kx2, kx3, kx4 = jax.random.split(key, 5)
    w1, b1, w2, b2 = init_params(kp, input_size, hidden_neurons, embedding_size)

    # 1) Small batch: single grid step, lane-dense packed path (pack=4).
    x = jax.random.normal(kx1, (8, input_size), jnp.float32)
    out = jax.block_until_ready(dynamic_network_forward(x, w1, b1, w2, b2))
    assert out.shape == (8, embedding_size)
    assert jnp.allclose(out, _reference(x, w1, b1, w2, b2), atol=1e-5, rtol=1e-5)

    # 2) Larger batch: 125 packed rows -> 4 grid steps with a ragged last block,
    #    resident weights, 128-lane unmasked output stores.
    x2 = jax.random.normal(kx2, (500, input_size), jnp.float32)
    out2 = jax.block_until_ready(
        dynamic_network_forward(x2, w1, b1, w2, b2, block_b=512))
    assert out2.shape == (500, embedding_size)
    assert jnp.allclose(out2, _reference(x2, w1, b1, w2, b2), atol=1e-5, rtol=1e-5)

    # 3) Batch not divisible by 2/4: unpacked fallback path + ragged edge, no padding.
    x3 = jax.random.normal(kx3, (9, input_size), jnp.float32)
    out3 = jax.block_until_ready(dynamic_network_forward(x3, w1, b1, w2, b2))
    assert out3.shape == (9, embedding_size)
    assert jnp.allclose(out3, _reference(x3, w1, b1, w2, b2), atol=1e-5, rtol=1e-5)

    # 4) bf16 matmul inputs (v5e MXU fast path) with f32 accumulation.
    x4 = jax.random.normal(kx4, (256, input_size), jnp.float32)
    out4 = jax.block_until_ready(
        dynamic_network_forward(x4, w1, b1, w2, b2, matmul_dtype=jnp.bfloat16))
    assert out4.shape == (256, embedding_size)
    assert jnp.allclose(out4, _reference(x4, w1, b1, w2, b2), atol=5e-2, rtol=5e-2)

    print("KERNEL_OK")
</pallas_src>

<mosaic_0001>
module attributes {stable_mosaic.version = 11 : i64} {
  func.func @_dynamic_net_kernel(%arg0: i32, %arg1: memref<2x144xf32, #tpu.memory_space<vmem>>, %arg2: memref<144x128xf32, #tpu.memory_space<vmem>>, %arg3: memref<1x128xf32, #tpu.memory_space<vmem>>, %arg4: memref<128x128xf32, #tpu.memory_space<vmem>>, %arg5: memref<1x128xf32, #tpu.memory_space<vmem>>, %arg6: memref<2x128xf32, #tpu.memory_space<vmem>>) attributes {dimension_semantics = [#tpu.dimension_semantics<parallel>], iteration_bounds = array<i64: 1>, scalar_prefetch = 0 : i64, scratch_operands = 0 : i64, tpu.core_type = #tpu.core_type<tc>, window_params = [{transform_indices = @transform_0, window_bounds = array<i64: 2, 144>}, {pipeline_mode = #tpu.pipeline_mode<synchronous>, transform_indices = @transform_1, window_bounds = array<i64: 144, 128>}, {pipeline_mode = #tpu.pipeline_mode<synchronous>, transform_indices = @transform_2, window_bounds = array<i64: 1, 128>}, {pipeline_mode = #tpu.pipeline_mode<synchronous>, transform_indices = @transform_3, window_bounds = array<i64: 128, 128>}, {pipeline_mode = #tpu.pipeline_mode<synchronous>, transform_indices = @transform_4, window_bounds = array<i64: 1, 128>}, {transform_indices = @transform_5, window_bounds = array<i64: 2, 128>}]} {
    %c0 = arith.constant 0 : index
    %c0_0 = arith.constant 0 : index
    %0 = vector.load %arg1[%c0, %c0_0] : memref<2x144xf32, #tpu.memory_space<vmem>>, vector<2x144xf32>
    %c0_1 = arith.constant 0 : index
    %c0_2 = arith.constant 0 : index
    %1 = vector.load %arg2[%c0_1, %c0_2] : memref<144x128xf32, #tpu.memory_space<vmem>>, vector<144x128xf32>
    %cst = arith.constant dense<0.000000e+00> : vector<2x128xf32>
    %2 = tpu.matmul %0, %1, %cst {dimension_numbers = #tpu.dot_dimension_numbers<[1], [0], [0], [1], [0, 0, 1, 1], [], []>} : vector<2x144xf32>, vector<144x128xf32>, vector<2x128xf32> -> vector<2x128xf32>
    %c0_3 = arith.constant 0 : index
    %c0_4 = arith.constant 0 : index
    %3 = vector.load %arg3[%c0_3, %c0_4] : memref<1x128xf32, #tpu.memory_space<vmem>>, vector<1x128xf32>
    %4 = vector.broadcast %3 : vector<1x128xf32> to vector<2x128xf32>
    %5 = arith.addf %2, %4 : vector<2x128xf32>
    %cst_5 = arith.constant 0.000000e+00 : f32
    %6 = vector.broadcast %cst_5 : f32 to vector<2x128xf32>
    %7 = arith.maximumf %5, %6 : vector<2x128xf32>
    %c0_6 = arith.constant 0 : index
    %c0_7 = arith.constant 0 : index
    %8 = vector.load %arg4[%c0_6, %c0_7] : memref<128x128xf32, #tpu.memory_space<vmem>>, vector<128x128xf32>
    %cst_8 = arith.constant dense<0.000000e+00> : vector<2x128xf32>
    %9 = tpu.matmul %7, %8, %cst_8 {dimension_numbers = #tpu.dot_dimension_numbers<[1], [0], [0], [1], [0, 0, 1, 1], [], []>} : vector<2x128xf32>, vector<128x128xf32>, vector<2x128xf32> -> vector<2x128xf32>
    %c0_9 = arith.constant 0 : index
    %c0_10 = arith.constant 0 : index
    %10 = vector.load %arg5[%c0_9, %c0_10] : memref<1x128xf32, #tpu.memory_space<vmem>>, vector<1x128xf32>
    %11 = vector.broadcast %10 : vector<1x128xf32> to vector<2x128xf32>
    %12 = arith.addf %9, %11 : vector<2x128xf32>
    %13 = math.tanh %12 : vector<2x128xf32>
    %c0_11 = arith.constant 0 : index
    %c0_12 = arith.constant 0 : index
    %14 = vector.load %arg6[%c0_11, %c0_12] : memref<2x128xf32, #tpu.memory_space<vmem>>, vector<2x128xf32>
    tpu.vector_store %arg6[%c0_11, %c0_12], %13 {strides = array<i32>} : memref<2x128xf32, #tpu.memory_space<vmem>>, vector<2x128xf32>,
    return
  }
  func.func @transform_0(%arg0: i32) -> (i32, i32) {
    %c0_i32 = arith.constant 0 : i32
    %c0_i32_0 = arith.constant 0 : i32
    return %arg0, %c0_i32 : i32, i32
  }
  func.func @transform_1(%arg0: i32) -> (i32, i32) {
    %c0_i32 = arith.constant 0 : i32
    %c0_i32_0 = arith.constant 0 : i32
    %c0_i32_1 = arith.constant 0 : i32
    return %c0_i32, %c0_i32_0 : i32, i32
  }
  func.func @transform_2(%arg0: i32) -> (i32, i32) {
    %c0_i32 = arith.constant 0 : i32
    %c0_i32_0 = arith.constant 0 : i32
    %c0_i32_1 = arith.constant 0 : i32
    return %c0_i32, %c0_i32_0 : i32, i32
  }
  func.func @transform_3(%arg0: i32) -> (i32, i32) {
    %c0_i32 = arith.constant 0 : i32
    %c0_i32_0 = arith.constant 0 : i32
    %c0_i32_1 = arith.constant 0 : i32
    return %c0_i32, %c0_i32_0 : i32, i32
  }
  func.func @transform_4(%arg0: i32) -> (i32, i32) {
    %c0_i32 = arith.constant 0 : i32
    %c0_i32_0 = arith.constant 0 : i32
    %c0_i32_1 = arith.constant 0 : i32
    return %c0_i32, %c0_i32_0 : i32, i32
  }
  func.func @transform_5(%arg0: i32) -> (i32, i32) {
    %c0_i32 = arith.constant 0 : i32
    %c0_i32_0 = arith.constant 0 : i32
    return %arg0, %c0_i32 : i32, i32
  }
}

</mosaic_0001>

<llo_original>
// kernel: tpu_custom_call.1
$region0: #{tpu_custom_call.1}
  #allocation0 [shape = 'u32[]', space=smem, size = 0x4, offset = 0x4, fixed_abs, tag = 'smem constant byte address 0x4 - core index']
  #allocation1 [shape = 'u32[144,128]{1,0:T(1,128)}', space=vmem, size = 0x12000, scoped, tag = 'internal scratch']
  %s0 = inlined_call_operand.hbm [shape: f32[2,144], index: 0, kind: input, shape index: {}]
  %s1 = inlined_call_operand.hbm [shape: f32[144,128], index: 1, kind: input, shape index: {}]
  %s2 = inlined_call_operand.vmem [shape: f32[1,128], index: 2, kind: input, shape index: {}]
  %s3 = inlined_call_operand.hbm [shape: f32[128,128], index: 3, kind: input, shape index: {}]
  %s4 = inlined_call_operand.vmem [shape: f32[1,128], index: 4, kind: input, shape index: {}]
  %s5 = inlined_call_operand.hbm [shape: f32[2,128], index: 5, kind: output, shape index: {}]
  %s6 = sld [smem:[#allocation0]]
  $region42: #{tpu_custom_call.1} parent=0
    _
  %s8 = ssub.s32 1, %s6
  %s9 = scalar_select 0, %s8, %s6
  $region1: #{tpu_custom_call.1} parent=0
    #allocation2 [shape = 'u8[2048]{0}', space=vmem, size = 0x800, scoped, tag = 'input window, operand 0, single buffered']
    #allocation3 [shape = 's32[1]{0}', space=sflag, size = 0x4, scoped, tag = 'scoped memory for tpu_custom_call.1']
    #allocation4 [shape = 's32[1]{0}', space=sflag, size = 0x4, scoped, tag = 'scoped memory for tpu_custom_call.1']
    #allocation5 [shape = 'u8[73728]{0}', space=vmem, size = 0x12000, scoped, tag = 'input window, operand 1, single buffered']
    #allocation6 [shape = 's32[1]{0}', space=sflag, size = 0x4, scoped, tag = 'scoped memory for tpu_custom_call.1']
    #allocation7 [shape = 'u8[65536]{0}', space=vmem, size = 0x10000, scoped, tag = 'input window, operand 3, single buffered']
    #allocation8 [shape = 'u8[1024]{0}', space=vmem, size = 0x400, scoped, tag = 'output window, operand 0, single buffered']
    %10 = vsyncpa [#allocation3], 0
    %11 = vsyncpa [#allocation6], 0
    %12 = vsyncpa [#allocation4], 0
    // Predicated region
    $region2: #{tpu_custom_call.1} parent=1 // pred_check
      _
    $region3: #{tpu_custom_call.1} parent=1 // pred_check_branch
      %14 = sbr.rel (0) target = $region5
    $region4: #{tpu_custom_call.1} parent=1 // pred_region
      %s16 = ssub.s32 64, 64
      %17 = vsyncadd [#allocation3], %s16
      %s19 = sshll.u32 [#allocation2], 4
      %s20 = int_to_ptr.vmem [resolvable:$true] %s19
      %22 = dma.hbm_to_vmem [thread:$0]  %s0, 64, %s20, [#allocation3]
    $region5: #{tpu_custom_call.1} parent=1 // pred_fallthru
      _
    // Predicated region
    $region6: #{tpu_custom_call.1} parent=1 // pred_check
      _
    $region7: #{tpu_custom_call.1} parent=1 // pred_check_branch
      %24 = sbr.rel (0) target = $region9
    $region8: #{tpu_custom_call.1} parent=1 // pred_region
      %s26 = ssub.s32 2304, 2304
      %27 = vsyncadd [#allocation6], %s26
      %s28 = sshll.u32 [#allocation5], 4
      %s29 = int_to_ptr.vmem [resolvable:$true] %s28
      %34 = dma.hbm_to_vmem [thread:$0]  %s1, 2304, %s29, [#allocation6], 128, 128, 8
    $region9: #{tpu_custom_call.1} parent=1 // pred_fallthru
      _
    // Predicated region
    $region10: #{tpu_custom_call.1} parent=1 // pred_check
      _
    $region11: #{tpu_custom_call.1} parent=1 // pred_check_branch
      %36 = sbr.rel (0) target = $region13
    $region12: #{tpu_custom_call.1} parent=1 // pred_region
      _
    $region13: #{tpu_custom_call.1} parent=1 // pred_fallthru
      _
    // Predicated region
    $region14: #{tpu_custom_call.1} parent=1 // pred_check
      _
    $region15: #{tpu_custom_call.1} parent=1 // pred_check_branch
      %38 = sbr.rel (0) target = $region17
    $region16: #{tpu_custom_call.1} parent=1 // pred_region
      %s40 = ssub.s32 2048, 2048
      %41 = vsyncadd [#allocation6], %s40
      %s42 = sshll.u32 [#allocation7], 4
      %s43 = int_to_ptr.vmem [resolvable:$true] %s42
      %48 = dma.hbm_to_vmem [thread:$0]  %s3, 2048, %s43, [#allocation6], 128, 128, 8
    $region17: #{tpu_custom_call.1} parent=1 // pred_fallthru
      _
    // Predicated region
    $region18: #{tpu_custom_call.1} parent=1 // pred_check
      _
    $region19: #{tpu_custom_call.1} parent=1 // pred_check_branch
      %50 = sbr.rel (0) target = $region21
    $region20: #{tpu_custom_call.1} parent=1 // pred_region
      _
    $region21: #{tpu_custom_call.1} parent=1 // pred_fallthru
      _
    // Predicated region
    $region22: #{tpu_custom_call.1} parent=1 // pred_check
      _
    $region23: #{tpu_custom_call.1} parent=1 // pred_check_branch
      %52 = sbr.rel (0) target = $region25
    $region24: #{tpu_custom_call.1} parent=1 // pred_region
      %53 = dma.done [#allocation3], 64
    $region25: #{tpu_custom_call.1} parent=1 // pred_fallthru
      _
    // Predicated region
    $region26: #{tpu_custom_call.1} parent=1 // pred_check
      _
    $region27: #{tpu_custom_call.1} parent=1 // pred_check_branch
      %55 = sbr.rel (0) target = $region29
    $region28: #{tpu_custom_call.1} parent=1 // pred_region
      %56 = dma.done [#allocation6], 2304
    $region29: #{tpu_custom_call.1} parent=1 // pred_fallthru
      _
    // Predicated region
    $region30: #{tpu_custom_call.1} parent=1 // pred_check
      _
    $region31: #{tpu_custom_call.1} parent=1 // pred_check_branch
      %58 = sbr.rel (0) target = $region33
    $region32: #{tpu_custom_call.1} parent=1 // pred_region
      %59 = dma.done [#allocation6], 2048
    $region33: #{tpu_custom_call.1} parent=1 // pred_fallthru
      _
    %v60 = vld [vmem:[#allocation2] sm:$0xf]
    %v61 = vld [vmem:[#allocation5] sm:$0xff]
    %v62 = vld [vmem:[#allocation5 + $0x8] sm:$0xff]
    %v63 = vld [vmem:[#allocation5 + $0x10] sm:$0xff]
    %v64 = vld [vmem:[#allocation5 + $0x18] sm:$0xff]
    %v65 = vld [vmem:[#allocation5 + $0x20] sm:$0xff]
    %v66 = vld [vmem:[#allocation5 + $0x28] sm:$0xff]
    %v67 = vld [vmem:[#allocation5 + $0x30] sm:$0xff]
    %v68 = vld [vmem:[#allocation5 + $0x38] sm:$0xff]
    %v69 = vld [vmem:[#allocation5 + $0x40] sm:$0xff]
    %v70 = vld [vmem:[#allocation5 + $0x48] sm:$0xff]
    %v71 = vld [vmem:[#allocation5 + $0x50] sm:$0xff]
    %v72 = vld [vmem:[#allocation5 + $0x58] sm:$0xff]
    %v73 = vld [vmem:[#allocation5 + $0x60] sm:$0xff]
    %v74 = vld [vmem:[#allocation5 + $0x68] sm:$0xff]
    %v75 = vld [vmem:[#allocation5 + $0x70] sm:$0xff]
    %v76 = vld [vmem:[#allocation5 + $0x78] sm:$0xff]
    %v77 = vld [vmem:[#allocation5 + $0x80] sm:$0xff]
    %v78 = vld [vmem:[#allocation5 + $0x88] sm:$0xff]
    %v79 = vld [vmem:[%s2] sm:$0x1]
    %v81 = vlaneseq
    %v82 = vshrl.u32 %v81, 7
    %v83 = vsub.s32 0, %v82
    %v84 = vrot.slane %v79, %v83
    %v88 = vunpack.c.l.s4 1983009808
    %v89 = vunpack.c.0.s8 %v88
    %v90 = vlaneseq
    %v91 = vshrl.u32 %v90, 7
    %v92 = vsub.s32 %v89, %v91
    %v93 = vrot.slane %v60, %v92
    %v94 = vcombine.high %v93, %v93
    %vm96 = vcmask 130048
    %v97 = vsel %vm96, %v94, 0
    %99 = vmatprep.subr.mxu0 0.0
    %100 = vmatpush1.msra.mxu0 %v76
    %101 = vmatprep.subr.mxu0 0.0
    %102 = vmatpush1.msra.mxu0 %v75
    %103 = vmatprep.subr.mxu0 0.0
    %104 = vmatpush1.msra.mxu0 %v74
    %105 = vmatprep.subr.mxu0 0.0
    %106 = vmatpush1.msra.mxu0 %v73
    %107 = vmatprep.subr.mxu0 0.0
    %108 = vmatpush1.msra.mxu0 %v72
    %109 = vmatprep.subr.mxu0 0.0
    %110 = vmatpush1.msra.mxu0 %v71
    %111 = vmatprep.subr.mxu0 0.0
    %112 = vmatpush1.msra.mxu0 %v70
    %113 = vmatprep.subr.mxu0 0.0
    %114 = vmatpush1.msra.mxu0 %v69
    %115 = vmatprep.subr.mxu0 0.0
    %116 = vmatpush1.msra.mxu0 %v68
    %117 = vmatprep.subr.mxu0 0.0
    %118 = vmatpush1.msra.mxu0 %v67
    %119 = vmatprep.subr.mxu0 0.0
    %120 = vmatpush1.msra.mxu0 %v66
    %121 = vmatprep.subr.mxu0 0.0
    %122 = vmatpush1.msra.mxu0 %v65
    %123 = vmatprep.subr.mxu0 0.0
    %124 = vmatpush1.msra.mxu0 %v64
    %125 = vmatprep.subr.mxu0 0.0
    %126 = vmatpush1.msra.mxu0 %v63
    %127 = vmatprep.subr.mxu0 0.0
    %128 = vmatpush1.msra.mxu0 %v62
    %129 = vmatprep.subr.mxu0 0.0
    %130 = vmatpush1.msra.mxu0 %v61
    %131 = vmatprep.subr.mxu0 0.0
    %132 = vmatpush2.msra.mxu0 0.0
    %133 = vmatprep.subr.mxu0 0.0
    %134 = vmatpush2.msra.mxu0 0.0
    %135 = vmatprep.subr.mxu0 0.0
    %136 = vmatpush2.msra.mxu0 0.0
    %137 = vmatprep.subr.mxu0 0.0
    %138 = vmatpush2.msra.mxu0 0.0
    %139 = vmatprep.subr.mxu0 0.0
    %140 = vmatpush2.msra.mxu0 0.0
    %141 = vmatprep.subr.mxu0 0.0
    %142 = vmatpush2.msra.mxu0 0.0
    %143 = vmatprep.subr.mxu0 0.0
    %144 = vmatpush2.msra.mxu0 0.0
    %145 = vmatprep.subr.mxu0 0.0
    %146 = vmatpush2.msra.mxu0 0.0
    %147 = vmatprep.subr.mxu0 0.0
    %148 = vmatpush2.msra.mxu0 0.0
    %149 = vmatprep.subr.mxu0 0.0
    %150 = vmatpush2.msra.mxu0 0.0
    %151 = vmatprep.subr.mxu0 0.0
    %152 = vmatpush2.msra.mxu0 0.0
    %153 = vmatprep.subr.mxu0 0.0
    %154 = vmatpush2.msra.mxu0 0.0
    %155 = vmatprep.subr.mxu0 0.0
    %156 = vmatpush2.msra.mxu0 0.0
    %157 = vmatprep.subr.mxu0 0.0
    %158 = vmatpush2.msra.mxu0 0.0
    %159 = vmatprep.subr.mxu0 0.0
    %160 = vmatpush2.msra.mxu0 %v78
    %161 = vmatprep.subr.mxu0 0.0
    %162 = vmatpush2.msra.mxu0 %v77
    %163 = vmatprep.mubr.f32.mxu0 %v97
    %164 = vmatmul.mubr.f32.gmra.mxu0 %v93
    %v165 = vpop.f32.mrf.mxu0
    %v166 = vadd.f32 %v84, %v165
    %v167 = vpop.f32.mrf.mxu0
    %168 = vdwg.mxu0
    %v169 = vmax.f32 %v166, 0.0
    %v170 = vld [vmem:[#allocation7] sm:$0xff]
    %v171 = vld [vmem:[#allocation7 + $0x8] sm:$0xff]
    %v172 = vld [vmem:[#allocation7 + $0x10] sm:$0xff]
    %v173 = vld [vmem:[#allocation7 + $0x18] sm:$0xff]
    %v174 = vld [vmem:[#allocation7 + $0x20] sm:$0xff]
    %v175 = vld [vmem:[#allocation7 + $0x28] sm:$0xff]
    %v176 = vld [vmem:[#allocation7 + $0x30] sm:$0xff]
    %v177 = vld [vmem:[#allocation7 + $0x38] sm:$0xff]
    %v178 = vld [vmem:[#allocation7 + $0x40] sm:$0xff]
    %v179 = vld [vmem:[#allocation7 + $0x48] sm:$0xff]
    %v180 = vld [vmem:[#allocation7 + $0x50] sm:$0xff]
    %v181 = vld [vmem:[#allocation7 + $0x58] sm:$0xff]
    %v182 = vld [vmem:[#allocation7 + $0x60] sm:$0xff]
    %v183 = vld [vmem:[#allocation7 + $0x68] sm:$0xff]
    %v184 = vld [vmem:[#allocation7 + $0x70] sm:$0xff]
    %v185 = vld [vmem:[#allocation7 + $0x78] sm:$0xff]
    %v186 = vld [vmem:[%s4] sm:$0x1]
    %v188 = vlaneseq
    %v189 = vshrl.u32 %v188, 7
    %v190 = vsub.s32 0, %v189
    %v191 = vrot.slane %v186, %v190
    %193 = vmatprep.subr.mxu0 0.0
    %194 = vmatpush1.msra.mxu0 %v185
    %195 = vmatprep.subr.mxu0 0.0
    %196 = vmatpush1.msra.mxu0 %v184
    %197 = vmatprep.subr.mxu0 0.0
    %198 = vmatpush1.msra.mxu0 %v183
    %199 = vmatprep.subr.mxu0 0.0
    %200 = vmatpush1.msra.mxu0 %v182
    %201 = vmatprep.subr.mxu0 0.0
    %202 = vmatpush1.msra.mxu0 %v181
    %203 = vmatprep.subr.mxu0 0.0
    %204 = vmatpush1.msra.mxu0 %v180
    %205 = vmatprep.subr.mxu0 0.0
    %206 = vmatpush1.msra.mxu0 %v179
    %207 = vmatprep.subr.mxu0 0.0
    %208 = vmatpush1.msra.mxu0 %v178
    %209 = vmatprep.subr.mxu0 0.0
    %210 = vmatpush1.msra.mxu0 %v177
    %211 = vmatprep.subr.mxu0 0.0
    %212 = vmatpush1.msra.mxu0 %v176
    %213 = vmatprep.subr.mxu0 0.0
    %214 = vmatpush1.msra.mxu0 %v175
    %215 = vmatprep.subr.mxu0 0.0
    %216 = vmatpush1.msra.mxu0 %v174
    %217 = vmatprep.subr.mxu0 0.0
    %218 = vmatpush1.msra.mxu0 %v173
    %219 = vmatprep.subr.mxu0 0.0
    %220 = vmatpush1.msra.mxu0 %v172
    %221 = vmatprep.subr.mxu0 0.0
    %222 = vmatpush1.msra.mxu0 %v171
    %223 = vmatprep.subr.mxu0 0.0
    %224 = vmatpush1.msra.mxu0 %v170
    %225 = vmatprep.subr.mxu0 0.0
    %226 = vmatpush2.msra.mxu0 0.0
    %227 = vmatprep.subr.mxu0 0.0
    %228 = vmatpush2.msra.mxu0 0.0
    %229 = vmatprep.subr.mxu0 0.0
    %230 = vmatpush2.msra.mxu0 0.0
    %231 = vmatprep.subr.mxu0 0.0
    %232 = vmatpush2.msra.mxu0 0.0
    %233 = vmatprep.subr.mxu0 0.0
    %234 = vmatpush2.msra.mxu0 0.0
    %235 = vmatprep.subr.mxu0 0.0
    %236 = vmatpush2.msra.mxu0 0.0
    %237 = vmatprep.subr.mxu0 0.0
    %238 = vmatpush2.msra.mxu0 0.0
    %239 = vmatprep.subr.mxu0 0.0
    %240 = vmatpush2.msra.mxu0 0.0
    %241 = vmatprep.subr.mxu0 0.0
    %242 = vmatpush2.msra.mxu0 0.0
    %243 = vmatprep.subr.mxu0 0.0
    %244 = vmatpush2.msra.mxu0 0.0
    %245 = vmatprep.subr.mxu0 0.0
    %246 = vmatpush2.msra.mxu0 0.0
    %247 = vmatprep.subr.mxu0 0.0
    %248 = vmatpush2.msra.mxu0 0.0
    %249 = vmatprep.subr.mxu0 0.0
    %250 = vmatpush2.msra.mxu0 0.0
    %251 = vmatprep.subr.mxu0 0.0
    %252 = vmatpush2.msra.mxu0 0.0
    %253 = vmatprep.subr.mxu0 0.0
    %254 = vmatpush2.msra.mxu0 0.0
    %255 = vmatprep.subr.mxu0 0.0
    %256 = vmatpush2.msra.mxu0 0.0
    %257 = vmatprep.mubr.f32.mxu0 0.0
    %258 = vmatmul.mubr.f32.gmra.mxu0 %v169
    %v259 = vpop.f32.mrf.mxu0
    %v260 = vadd.f32 %v191, %v259
    %v261 = vpop.f32.mrf.mxu0
    %262 = vdwg.mxu0
    %v263 = vtanh.pop %v260
    %264 = vst [vmem:[#allocation8] sm:$0x3] %v263
    // Predicated region
    $region34: #{tpu_custom_call.1} parent=1 // pred_check
      _
    $region35: #{tpu_custom_call.1} parent=1 // pred_check_branch
      %266 = sbr.rel (0) target = $region37
    $region36: #{tpu_custom_call.1} parent=1 // pred_region
      %s268 = ssub.s32 32, 32
      %269 = vsyncadd [#allocation4], %s268
      %s271 = sshll.u32 [#allocation8], 4
      %s272 = int_to_ptr.vmem [resolvable:$true] %s271
      %274 = dma.vmem_to_hbm [thread:$0]  %s272, 32, %s5, [#allocation4]
    $region37: #{tpu_custom_call.1} parent=1 // pred_fallthru
      _
    // Predicated region
    $region38: #{tpu_custom_call.1} parent=1 // pred_check
      _
    $region39: #{tpu_custom_call.1} parent=1 // pred_check_branch
      %276 = sbr.rel (0) target = $region41
    $region40: #{tpu_custom_call.1} parent=1 // pred_region
      %277 = dma.done [#allocation4], 32
    $region41: #{tpu_custom_call.1} parent=1 // pred_fallthru
      _
    %278 = vsyncpa [#allocation3], 1
    %279 = vsyncpa [#allocation6], 1
    %280 = vsyncpa [#allocation4], 1

</llo_original>
